<compile_context>
chip_gen: v5e
topology: v5e:2x2
jax: 0.10.0
libtpu: 0.0.40
codegen_flags: <defaults>
</compile_context>

<pallas_src>
import jax
import jax.numpy as jnp
from jax.experimental import pallas as pl
from jax.experimental.pallas import tpu as pltpu

KERNEL_SIZE = 3
STRIDE = 1
PADDING = 0  # no padding; ceil_mode is irrelevant for stride=1

# Keep per-step tiles around this many sublane rows: measured data shows ~512
# rows already reaches ~85% of HBM roofline, so bigger tiles only forfeit
# pipelining granularity.
_TARGET_TILE_ROWS = 1024
# Force at least this many grid steps (when there are enough images) so the
# BlockSpec double-buffering can overlap input DMA, compute and output DMA,
# and so v7x can shard the parallel axis across its 2 TensorCores.
_MIN_GRID_STEPS = 4


def _maxpool_kernel(x_ref, o_ref):
    """3x3/stride-1 max pool over a block of whole images.

    x_ref: (imgs, H, W) input tile in VMEM.
    o_ref: (imgs, H_out, W_out) output tile, H_out = H-2, W_out = W-2.
    """
    h_out = o_ref.shape[1]
    w_out = o_ref.shape[2]

    # --- H (sublane) reduction: three shifted reads of the VMEM tile. ---
    # Shifted ref reads keep the work on the vld slots instead of issuing
    # sublane rotations on the XLU/ext slot.
    mh = jnp.maximum(
        x_ref[:, 0:h_out, :],
        jnp.maximum(x_ref[:, 1:h_out + 1, :], x_ref[:, 2:h_out + 2, :]),
    )  # (imgs, h_out, W)

    # --- W (lane) reduction: lane-shifted slices of the partial max. ---
    # Offsets 0/1/2 stay within one 128-lane tile, so these are in-vreg lane
    # shifts (no VMEM round-trip), and the result is exactly the valid region.
    m = jnp.maximum(
        mh[:, :, 0:w_out],
        jnp.maximum(mh[:, :, 1:w_out + 1], mh[:, :, 2:w_out + 2]),
    )  # (imgs, h_out, w_out)

    o_ref[...] = m


def _round_up(a, b):
    return ((a + b - 1) // b) * b


def _sublane_pack(dtype):
    """Sublane packing factor: 8 for 4-byte, 16 for 2-byte, 32 for 1-byte."""
    itemsize = jnp.dtype(dtype).itemsize
    return max(8, 32 // itemsize)


def _padded_image_bytes(h, w, dtype):
    """VMEM bytes of one (h, w) image after (sublane, lane) tiling padding."""
    pack = _sublane_pack(dtype)
    return _round_up(h, pack) * _round_up(w, 128) * jnp.dtype(dtype).itemsize


def _vmem_capacity_bytes():
    """Physical VMEM of the local chip; conservative fallback if unavailable."""
    try:
        return int(pltpu.get_tpu_info().vmem_capacity_bytes)
    except Exception:
        return 64 * 1024 * 1024  # v7x per-core VMEM (smallest of v5e/v6e/v7x)


def _pick_images_per_block(n_images, h, w, h_out, w_out, dtype, vmem_limit):
    """Whole images per grid step, sized from padded VMEM bytes.

    Constraints:
      * padded(in tile) + padded(out tile), double-buffered plus headroom for
        in-kernel intermediates, must fit under vmem_limit (factor 3),
      * keep the tile around _TARGET_TILE_ROWS sublane rows,
      * keep the grid at >= _MIN_GRID_STEPS steps when enough images exist.
    """
    per_img = _padded_image_bytes(h, w, dtype) + _padded_image_bytes(h_out, w_out, dtype)
    imgs_by_vmem = max(1, vmem_limit // (3 * per_img))
    imgs_by_rows = max(1, _TARGET_TILE_ROWS // _round_up(h, _sublane_pack(dtype)))
    imgs_by_grid = max(1, n_images // _MIN_GRID_STEPS)
    return max(1, min(imgs_by_vmem, imgs_by_rows, imgs_by_grid, n_images))


def maxpool(x):
    """MaxPool2d(kernel_size=3, stride=1, padding=0, ceil_mode=True) on NCHW."""
    n, c, h, w = x.shape
    assert h >= KERNEL_SIZE and w >= KERNEL_SIZE, "spatial dims must be >= 3"
    h_out = h - (KERNEL_SIZE - 1)
    w_out = w - (KERNEL_SIZE - 1)

    n_images = n * c
    # Merge (N, C) into one leading axis -- metadata-only reshape.
    x3d = x.reshape(n_images, h, w)

    # Chip-aware VMEM limit: 3/4 of physical, capped at 96 MiB (=> ~48 MiB on
    # v7x's 64 MiB parts, 96 MiB on 128 MiB v5e/v6e parts).
    vmem_cap = _vmem_capacity_bytes()
    vmem_limit = min((vmem_cap * 3) // 4, 96 * 1024 * 1024)

    imgs_per_block = _pick_images_per_block(
        n_images, h, w, h_out, w_out, x.dtype, vmem_limit
    )
    grid = (pl.cdiv(n_images, imgs_per_block),)

    # TODO(synk): for W < 128 the lane axis is sparse (e.g. 16/128 live lanes
    # here); a layout-preserving fold of several rows into the lane axis would
    # densify loads/stores but complicates the H-direction stencil -- revisit
    # if xprof shows the masked vst path dominating.
    # TODO(synk): images whose padded footprint alone exceeds the VMEM budget
    # would need within-image H tiling with a 2-row halo; not needed for
    # SqueezeSeg-sized tensors.
    out3d = pl.pallas_call(
        _maxpool_kernel,
        out_shape=jax.ShapeDtypeStruct((n_images, h_out, w_out), x.dtype),
        grid_spec=pltpu.PrefetchScalarGridSpec(
            num_scalar_prefetch=0,
            grid=grid,
            in_specs=[pl.BlockSpec((imgs_per_block, h, w), lambda i: (i, 0, 0))],
            out_specs=pl.BlockSpec(
                (imgs_per_block, h_out, w_out), lambda i: (i, 0, 0)
            ),
        ),
        compiler_params=pltpu.CompilerParams(
            dimension_semantics=("parallel",),
            vmem_limit_bytes=int(vmem_limit),
        ),
    )(x3d)

    # Split the leading axis back into (N, C) -- metadata-only reshape.
    return out3d.reshape(n, c, h_out, w_out)


def _maxpool_ref(x):
    """Pure-JAX reference (PyTorch MaxPool2d(3, 1, 0, ceil_mode=True))."""
    h_out = x.shape[-2] - (KERNEL_SIZE - 1)
    w_out = x.shape[-1] - (KERNEL_SIZE - 1)
    m = x[..., 0:h_out, 0:w_out]
    for dh in range(KERNEL_SIZE):
        for dw in range(KERNEL_SIZE):
            m = jnp.maximum(m, x[..., dh:dh + h_out, dw:dw + w_out])
    return m


if __name__ == "__main__":
    key = jax.random.PRNGKey(0)
    # Small NCHW input consistent with the module's forward.
    x = jax.random.normal(key, (2, 4, 16, 16), dtype=jnp.float32)

    out = maxpool(x)
    out = jax.block_until_ready(out)

    ref = _maxpool_ref(x)
    assert out.shape == (2, 4, 14, 14), out.shape
    assert jnp.allclose(out, ref), "Pallas maxpool mismatch vs reference"

    print("KERNEL_OK")
</pallas_src>

<mosaic_0001>
module attributes {stable_mosaic.version = 11 : i64} {
  func.func @_maxpool_kernel(%arg0: i32, %arg1: memref<2x16x16xf32, #tpu.memory_space<vmem>>, %arg2: memref<2x14x14xf32, #tpu.memory_space<vmem>>) attributes {dimension_semantics = [#tpu.dimension_semantics<parallel>], iteration_bounds = array<i64: 4>, scalar_prefetch = 0 : i64, scratch_operands = 0 : i64, tpu.core_type = #tpu.core_type<tc>, window_params = [{transform_indices = @transform_0, window_bounds = array<i64: 2, 16, 16>}, {transform_indices = @transform_1, window_bounds = array<i64: 2, 14, 14>}]} {
    %c0 = arith.constant 0 : index
    %c0_0 = arith.constant 0 : index
    %c0_1 = arith.constant 0 : index
    %0 = vector.load %arg1[%c0, %c0_0, %c0_1] : memref<2x16x16xf32, #tpu.memory_space<vmem>>, vector<2x14x16xf32>
    %c0_2 = arith.constant 0 : index
    %c1 = arith.constant 1 : index
    %c0_3 = arith.constant 0 : index
    %1 = vector.load %arg1[%c0_2, %c1, %c0_3] : memref<2x16x16xf32, #tpu.memory_space<vmem>>, vector<2x14x16xf32>
    %c0_4 = arith.constant 0 : index
    %c2 = arith.constant 2 : index
    %c0_5 = arith.constant 0 : index
    %2 = vector.load %arg1[%c0_4, %c2, %c0_5] : memref<2x16x16xf32, #tpu.memory_space<vmem>>, vector<2x14x16xf32>
    %3 = arith.maximumf %1, %2 : vector<2x14x16xf32>
    %4 = arith.maximumf %0, %3 : vector<2x14x16xf32>
    %5 = vector.extract_strided_slice %4 {offsets = [0, 0, 0], sizes = [2, 14, 14], strides = [1, 1, 1]} : vector<2x14x16xf32> to vector<2x14x14xf32>
    %6 = vector.extract_strided_slice %4 {offsets = [0, 0, 1], sizes = [2, 14, 14], strides = [1, 1, 1]} : vector<2x14x16xf32> to vector<2x14x14xf32>
    %7 = vector.extract_strided_slice %4 {offsets = [0, 0, 2], sizes = [2, 14, 14], strides = [1, 1, 1]} : vector<2x14x16xf32> to vector<2x14x14xf32>
    %8 = arith.maximumf %6, %7 : vector<2x14x14xf32>
    %9 = arith.maximumf %5, %8 : vector<2x14x14xf32>
    %c0_6 = arith.constant 0 : index
    %c0_7 = arith.constant 0 : index
    %c0_8 = arith.constant 0 : index
    %10 = vector.load %arg2[%c0_6, %c0_7, %c0_8] : memref<2x14x14xf32, #tpu.memory_space<vmem>>, vector<2x14x14xf32>
    tpu.vector_store %arg2[%c0_6, %c0_7, %c0_8], %9 {strides = array<i32>} : memref<2x14x14xf32, #tpu.memory_space<vmem>>, vector<2x14x14xf32>,
    return
  }
  func.func @transform_0(%arg0: i32) -> (i32, i32, i32) {
    %c0_i32 = arith.constant 0 : i32
    %c0_i32_0 = arith.constant 0 : i32
    %c0_i32_1 = arith.constant 0 : i32
    return %arg0, %c0_i32, %c0_i32_0 : i32, i32, i32
  }
  func.func @transform_1(%arg0: i32) -> (i32, i32, i32) {
    %c0_i32 = arith.constant 0 : i32
    %c0_i32_0 = arith.constant 0 : i32
    %c0_i32_1 = arith.constant 0 : i32
    return %arg0, %c0_i32, %c0_i32_0 : i32, i32, i32
  }
}

</mosaic_0001>

<llo_original>
// kernel: tpu_custom_call.1
$region0: #{tpu_custom_call.1}
  #allocation0 [shape = 'u32[]', space=smem, size = 0x4, offset = 0x4, fixed_abs, tag = 'smem constant byte address 0x4 - core index']
  #allocation1 [shape = 'u32[72,128]{1,0:T(1,128)}', space=vmem, size = 0x9000, scoped, tag = 'internal scratch']
  %s0 = inlined_call_operand.hbm [shape: f32[8,16,16], index: 0, kind: input, shape index: {}]
  %s1 = inlined_call_operand.vmem [shape: f32[8,14,14], index: 1, kind: output, shape index: {}]
  %s2 = sld [smem:[#allocation0]]
  $region41: #{tpu_custom_call.1} parent=0
    _
  %s4 = ssub.s32 1, %s2
  %s5 = scalar_select 0, %s4, %s2
  $region1: #{tpu_custom_call.1} parent=0
    #allocation2 [shape = 'u8[32768]{0}', space=vmem, size = 0x8000, scoped, tag = 'input window, operand 0']
    #allocation3 [shape = 's32[2]{0}', space=sflag, size = 0x8, scoped, tag = 'scoped memory for tpu_custom_call.1']
    %6 = vsyncpa [#allocation3], 0
    %s7 = scalar_lea.sflag [#allocation3], 1
    %8 = vsyncpa %s7, 0
    loop: start=0, step=1, limit=6
    $region2: #{tpu_custom_call.1} parent=1 // loop_pre_header
      _
    $region3: #{tpu_custom_call.1} parent=1 // loop_header
      %s10 = sphi 0, %s14
      %p11 = scmp.ge.s32.totalorder %s10, 6
      %s20 = sphi 0, %s22
      %s23 = sphi 0, %s20
      %s24 = sphi 0, %s23
      %s40 = sphi 0, %s24
      %s46 = sphi 0, %s48
      %s49 = sphi 0, %s46
      %s50 = sphi 0, %s49
      %s66 = sphi 0, %s50
    $region4: #{tpu_custom_call.1} parent=1 // loop_header_branch
      %13 = sbr.rel (%p11) target = $region8
    $region5: #{tpu_custom_call.1} parent=1 // loop_body
      %s15 = ssub.s32 %s10, 1
      %s16 = ssub.s32 %s10, 2
      %s17 = sadd.s32 %s10, 1
      %s18 = ssub.s32 %s10, %s17
      %p19 = scmp.eq.s32.totalorder %s18, 0
      %s21 = sadd.s32 %s20, 1
      %s22 = scalar_select %p19, %s20, %s21
      %p25 = pneg %p19
      %p26 = scmp.eq.s32.totalorder %s10, 3
      %p27 = por %p25, %p26
      %p28 = scmp.ne.s32.totalorder %s20, %s23
      %p29 = scmp.eq.s32.totalorder %s10, 0
      %p30 = por %p28, %p29
      %p31 = scmp.ne.s32.totalorder %s20, %s23
      %p32 = scmp.eq.s32.totalorder %s15, 3
      %p33 = por %p31, %p32
      %p34 = scmp.ne.s32.totalorder %s23, %s24
      %p35 = scmp.eq.s32.totalorder %s15, 0
      %p36 = por %p34, %p35
      %p37 = scmp.ne.s32.totalorder %s23, %s24
      %p38 = scmp.eq.s32.totalorder %s16, 3
      %p39 = por %p37, %p38
      %p41 = scmp.ne.s32.totalorder %s24, %s40
      %p42 = scmp.eq.s32.totalorder %s16, 0
      %p43 = por %p41, %p42
      %s44 = ssub.s32 %s10, %s17
      %p45 = scmp.eq.s32.totalorder %s44, 0
      %s47 = sadd.s32 %s46, 1
      %s48 = scalar_select %p45, %s46, %s47
      %p51 = pneg %p45
      %p52 = scmp.eq.s32.totalorder %s10, 3
      %p53 = por %p51, %p52
      %p54 = scmp.ne.s32.totalorder %s46, %s49
      %p55 = scmp.eq.s32.totalorder %s10, 0
      %p56 = por %p54, %p55
      %p57 = scmp.ne.s32.totalorder %s46, %s49
      %p58 = scmp.eq.s32.totalorder %s15, 3
      %p59 = por %p57, %p58
      %p60 = scmp.ne.s32.totalorder %s49, %s50
      %p61 = scmp.eq.s32.totalorder %s15, 0
      %p62 = por %p60, %p61
      %p63 = scmp.ne.s32.totalorder %s49, %s50
      %p64 = scmp.eq.s32.totalorder %s16, 3
      %p65 = por %p63, %p64
      %p67 = scmp.ne.s32.totalorder %s50, %s66
      %p68 = scmp.eq.s32.totalorder %s16, 0
      %p69 = por %p67, %p68
      %p70 = scmp.le.s32.totalorder 1, %s10
      %p71 = scmp.lt.s32.totalorder %s10, 5
      %p72 = pnand %p70, %p71
      %p73 = pneg %p72
      // Predicated region
      $region9: #{tpu_custom_call.1} parent=5 // pred_check
        _
      $region10: #{tpu_custom_call.1} parent=5 // pred_check_branch
        %75 = sbr.rel (%p72) target = $region12
      $region11: #{tpu_custom_call.1} parent=5 // pred_region
        %s76 = ssub.s32 %s10, 1
      $region12: #{tpu_custom_call.1} parent=5 // pred_fallthru
        _
      %p77 = scmp.lt.s32.totalorder %s10, 4
      // Predicated region
      $region13: #{tpu_custom_call.1} parent=5 // pred_check
        %p78 = pneg %p77
      $region14: #{tpu_custom_call.1} parent=5 // pred_check_branch
        %80 = sbr.rel (%p78) target = $region16
      $region15: #{tpu_custom_call.1} parent=5 // pred_region
        // Predicated region
        $region17: #{tpu_custom_call.1} parent=15 // pred_check
          %p81 = pneg %p30
        $region18: #{tpu_custom_call.1} parent=15 // pred_check_branch
          %83 = sbr.rel (%p81) target = $region20
        $region19: #{tpu_custom_call.1} parent=15 // pred_region
          %s84 = sand.u32 %s20, 1
          %s85 = scalar_lea.sflag [#allocation3], %s84
          %s86 = sand.u32 %s20, 1
          %s87 = smul.addr %s86, 32
          %s88 = scalar_lea.vmem [#allocation2], %s87
          %s89 = smul.u32 2, %s10
          %91 = vsyncadd %s85, 0
          %s92 = smul.addr %s89, 2
          %s93 = smul.addr %s92, 8
          %s94 = scalar_lea.hbm %s0, %s93
          %s95 = sshll.u32 %s94, 4
          %s96 = int_to_ptr.hbm [resolvable:$true] %s95
          %s97 = sshll.u32 %s88, 4
          %s98 = int_to_ptr.vmem [resolvable:$true] %s97
          %103 = dma.hbm_to_vmem [thread:$0]  %s96, 512, %s98, %s85, 128, 128, 8
        $region20: #{tpu_custom_call.1} parent=15 // pred_fallthru
          _
      $region16: #{tpu_custom_call.1} parent=5 // pred_fallthru
        _
      %p104 = scmp.le.s32.totalorder 1, %s10
      %p105 = scmp.lt.s32.totalorder %s10, 5
      %p106 = pnand %p104, %p105
      %p107 = pneg %p106
      // Predicated region
      $region21: #{tpu_custom_call.1} parent=5 // pred_check
        _
      $region22: #{tpu_custom_call.1} parent=5 // pred_check_branch
        %109 = sbr.rel (%p106) target = $region24
      $region23: #{tpu_custom_call.1} parent=5 // pred_region
        %s110 = ssub.s32 %s10, 1
        %s111 = sand.u32 %s23, 1
        %s112 = scalar_lea.sflag [#allocation3], %s111
        %s113 = sand.u32 %s23, 1
        %s114 = smul.addr %s113, 32
        %s115 = scalar_lea.vmem [#allocation2], %s114
        // Predicated region
        $region25: #{tpu_custom_call.1} parent=23 // pred_check
          %p116 = pneg %p36
        $region26: #{tpu_custom_call.1} parent=23 // pred_check_branch
          %118 = sbr.rel (%p116) target = $region28
        $region27: #{tpu_custom_call.1} parent=23 // pred_region
          %120 = dma.done %s112, 512
        $region28: #{tpu_custom_call.1} parent=23 // pred_fallthru
          _
        %s121 = sand.u32 %s23, 1
        %s122 = scalar_lea.sflag [#allocation3], %s121
        %s123 = sand.u32 %s23, 1
        %s124 = smul.addr %s123, 32
        %s125 = scalar_lea.vmem [#allocation2], %s124
        %p126 = pneg %p36
        %p127 = pneg %p33
        %p128 = pneg %p62
        %p129 = pneg %p59
        %s130 = smul.u32 2, %s15
        %p131 = scmp.lt.s32.totalorder %s130, 7
        %s132 = scalar_select %p131, %s130, 7
        %s133 = smul.addr %s132, 2
        %s134 = smul.addr %s133, 8
        %s135 = scalar_lea.vmem %s1, %s134
        %s136 = smul.u32 2, %s15
        %s137 = smul.u32 2, %s15
        %p138 = scmp.lt.s32.totalorder %s137, 7
        %s139 = scalar_select %p138, %s137, 7
        %s140 = smul.addr %s139, 2
        %s141 = smul.addr %s140, 8
        %s142 = scalar_lea.vmem %s1, %s141
        %s143 = smul.u32 2, %s15
        %v144 = vld [vmem:[%s115] sm:$0xff]
        %v145 = vld [vmem:[%s115 + $0x8] sm:$0x3f]
        %v146 = vld [vmem:[%s115 + $0x10] sm:$0xff]
        %v147 = vld [vmem:[%s115 + $0x18] sm:$0x3f]
        %v148 = vld [vmem:[%s115 + $0x1] sm:$0xff]
        %v149 = vld [vmem:[%s115 + $0x9] sm:$0x3f]
        %v150 = vld [vmem:[%s115 + $0x11] sm:$0xff]
        %v151 = vld [vmem:[%s115 + $0x19] sm:$0x3f]
        %v152 = vld [vmem:[%s115 + $0x2] sm:$0xff]
        %v153 = vld [vmem:[%s115 + $0xa] sm:$0x3f]
        %v154 = vld [vmem:[%s115 + $0x12] sm:$0xff]
        %v155 = vld [vmem:[%s115 + $0x1a] sm:$0x3f]
        %v156 = vmax.f32 %v148, %v152
        %v157 = vmax.f32 %v149, %v153
        %v158 = vmax.f32 %v150, %v154
        %v159 = vmax.f32 %v151, %v155
        %v160 = vmax.f32 %v144, %v156
        %v161 = vmax.f32 %v145, %v157
        %v162 = vmax.f32 %v146, %v158
        %v163 = vmax.f32 %v147, %v159
        %168 = vrot.lane.b32.xlu0 %v160, 127
        %v169 = vpop.permute.xlu0 %168
        %170 = vrot.lane.b32.xlu0 %v161, 127
        %v171 = vpop.permute.xlu0 %170
        %172 = vrot.lane.b32.xlu0 %v162, 127
        %v173 = vpop.permute.xlu0 %172
        %174 = vrot.lane.b32.xlu0 %v163, 127
        %v175 = vpop.permute.xlu0 %174
        %v180 = vmax.f32 %v160, %v169
        %v181 = vmax.f32 %v161, %v171
        %v182 = vmax.f32 %v162, %v173
        %v183 = vmax.f32 %v163, %v175
        %188 = vrot.lane.b32.xlu0 %v180, 127
        %v189 = vpop.permute.xlu0 %188
        %190 = vrot.lane.b32.xlu0 %v181, 127
        %v191 = vpop.permute.xlu0 %190
        %192 = vrot.lane.b32.xlu0 %v182, 127
        %v193 = vpop.permute.xlu0 %192
        %194 = vrot.lane.b32.xlu0 %v183, 127
        %v195 = vpop.permute.xlu0 %194
        %v200 = vmax.f32 %v160, %v189
        %v201 = vmax.f32 %v161, %v191
        %v202 = vmax.f32 %v162, %v193
        %v203 = vmax.f32 %v163, %v195
        %vm204 = vcmask 113664
        %205 = vst.msk [vmem:[%s142] sm:$0xff] %vm204, %v200
        %vm206 = vcmask 111616
        %207 = vst.msk [vmem:[%s142 + $0x8] sm:$0x3f] %vm206, %v201
        %208 = vst.msk [vmem:[%s142 + $0x10] sm:$0xff] %vm204, %v202
        %209 = vst.msk [vmem:[%s142 + $0x18] sm:$0x3f] %vm206, %v203
        %s210 = smul.u32 2, %s15
        %p211 = scmp.lt.s32.totalorder %s210, 7
        %s212 = scalar_select %p211, %s210, 7
        %s213 = smul.addr %s212, 2
        %s214 = smul.addr %s213, 8
        %s215 = scalar_lea.vmem %s1, %s214
        // Predicated region
        $region29: #{tpu_custom_call.1} parent=23 // pred_check
          %p216 = pneg %p59
        $region30: #{tpu_custom_call.1} parent=23 // pred_check_branch
          %218 = sbr.rel (%p216) target = $region32
        $region31: #{tpu_custom_call.1} parent=23 // pred_region
          %s219 = smul.u32 2, %s15
        $region32: #{tpu_custom_call.1} parent=23 // pred_fallthru
          _
      $region24: #{tpu_custom_call.1} parent=5 // pred_fallthru
        _
      %p220 = scmp.le.s32.totalorder 2, %s10
      // Predicated region
      $region33: #{tpu_custom_call.1} parent=5 // pred_check
        %p221 = pneg %p220
      $region34: #{tpu_custom_call.1} parent=5 // pred_check_branch
        %223 = sbr.rel (%p221) target = $region36
      $region35: #{tpu_custom_call.1} parent=5 // pred_region
        %s224 = ssub.s32 %s10, 2
        // Predicated region
        $region37: #{tpu_custom_call.1} parent=35 // pred_check
          %p225 = pneg %p65
        $region38: #{tpu_custom_call.1} parent=35 // pred_check_branch
          %227 = sbr.rel (%p225) target = $region40
        $region39: #{tpu_custom_call.1} parent=35 // pred_region
          %s228 = smul.u32 2, %s16
          %p229 = scmp.lt.s32.totalorder %s228, 7
          %s230 = scalar_select %p229, %s228, 7
          %s231 = smul.addr %s230, 2
          %s232 = smul.addr %s231, 8
          %s233 = scalar_lea.vmem %s1, %s232
        $region40: #{tpu_custom_call.1} parent=35 // pred_fallthru
          _
      $region36: #{tpu_custom_call.1} parent=5 // pred_fallthru
        _
    $region6: #{tpu_custom_call.1} parent=1 // loop_footer
      %s14 = sadd.s32 1, %s10
    $region7: #{tpu_custom_call.1} parent=1 // loop_footer_branch
      %9 = sbr.rel target = $region3
    $region8: #{tpu_custom_call.1} parent=1 // loop_exit
      _
    %234 = vsyncpa [#allocation3], 1
    %s235 = scalar_lea.sflag [#allocation3], 1
    %236 = vsyncpa %s235, 1

</llo_original>
